<compile_context>
chip_gen: v7x
topology: tpu7x:2x2x1
jax: 0.10.0
libtpu: 0.0.40
codegen_flags: <defaults>
</compile_context>

<pallas_src>
import jax
import jax.numpy as jnp
from jax.experimental import pallas as pl
from jax.experimental.pallas import tpu as pltpu

LANE = 128


def _siren_act_kernel(w0_ref, b0_ref, x_ref, o_ref):
    # w0_ref / b0_ref are shape-(1,) f32 scalars in SMEM.
    # Single affine + sin per element; cast back to the output dtype once.
    w0 = w0_ref[0]
    b0 = b0_ref[0]
    o_ref[...] = jnp.sin(w0 * x_ref[...] + b0).astype(o_ref.dtype)


def _device_kind() -> str:
    try:
        return jax.devices()[0].device_kind.lower()
    except Exception:
        return ""


def _num_tensorcores(kind: str) -> int:
    # v7x: 2 TensorCores per chip; v4 / v5p megacore presents 2 TCs per device.
    if "v7" in kind or "v4" in kind or "v5p" in kind:
        return 2
    return 1


def _block_bytes(kind: str) -> int:
    # v6e / v7x: 32 MiB default scoped VMEM -> 4 MiB per buffer (4 buffers =
    # 16 MiB with double buffering).  Everything else (v5e's 16 MiB default
    # scoped VMEM, older gens): stay at 2 MiB per buffer.
    if "v6" in kind or "v7" in kind:
        return 4 * 1024 * 1024
    return 2 * 1024 * 1024


def _sublane_min(dtype) -> int:
    # (8,128) tile for 32-bit, (16,128) for 16-bit, (32,128) for 8-bit dtypes.
    itemsize = jnp.dtype(dtype).itemsize
    return 8 * max(1, 4 // itemsize)


def _choose_block_rows(rows: int, dtype, num_tc: int, block_bytes: int) -> int:
    sub = _sublane_min(dtype)
    if rows <= sub:
        # Single block equal to the full array dims (allowed by the tiling rule).
        return rows
    itemsize = jnp.dtype(dtype).itemsize
    # Per-buffer VMEM cap expressed in rows, rounded down to the sublane tile.
    max_block_rows = max(sub, (block_bytes // (LANE * itemsize)) // sub * sub)
    # Minimum grid steps: 2 on single-TC chips (pipeline overlap), 4 on
    # dual-TC chips (2 steps per core for the "parallel" axis).
    min_steps = 2 * num_tc
    block = min(max_block_rows, max(sub, pl.cdiv(rows, min_steps)))
    block = max(sub, (block // sub) * sub)
    if num_tc > 1:
        # Best effort: keep the grid length a multiple of num_tc so the
        # parallel axis splits evenly across TensorCores (avoid e.g. a 3/2
        # split and ~20% load imbalance).
        g = pl.cdiv(rows, block)
        if g > 1 and g % num_tc:
            g2 = pl.cdiv(g, num_tc) * num_tc
            cand = max(sub, pl.cdiv(pl.cdiv(rows, g2), sub) * sub)
            if cand <= max_block_rows and pl.cdiv(rows, cand) % num_tc == 0:
                block = cand
    return block


def _siren_act_2d(x2d: jax.Array, w0_arr: jax.Array, b0_arr: jax.Array,
                  num_tc: int, block_bytes: int) -> jax.Array:
    rows = x2d.shape[0]
    dtype = x2d.dtype
    block_rows = _choose_block_rows(rows, dtype, num_tc, block_bytes)
    grid = (pl.cdiv(rows, block_rows),)
    n = rows * LANE
    itemsize = jnp.dtype(dtype).itemsize
    return pl.pallas_call(
        _siren_act_kernel,
        out_shape=jax.ShapeDtypeStruct((rows, LANE), dtype),
        grid=grid,
        in_specs=[
            pl.BlockSpec(memory_space=pltpu.SMEM),  # w0
            pl.BlockSpec(memory_space=pltpu.SMEM),  # b0
            pl.BlockSpec((block_rows, LANE), lambda i: (i, 0)),
        ],
        out_specs=pl.BlockSpec((block_rows, LANE), lambda i: (i, 0)),
        compiler_params=pltpu.CompilerParams(
            dimension_semantics=("parallel",),
        ),
        cost_estimate=pl.CostEstimate(
            flops=2 * n,
            transcendentals=n,
            bytes_accessed=2 * n * itemsize,
        ),
    )(w0_arr, b0_arr, x2d)


def siren_act(x: jax.Array, w0: jax.Array, b0: jax.Array) -> jax.Array:
    """Applies sin(w0 * x + b0) elementwise via a Pallas TPU kernel.

    x: any shape (e.g. NCHW), floating dtype.
    w0, b0: scalar parameters.
    """
    orig_shape = x.shape
    n = x.size
    dtype = x.dtype
    if n == 0:
        return x

    w0_f = jnp.asarray(w0, dtype=jnp.float32)
    b0_f = jnp.asarray(b0, dtype=jnp.float32)
    w0_arr = w0_f.reshape((1,))
    b0_arr = b0_f.reshape((1,))

    kind = _device_kind()
    num_tc = _num_tensorcores(kind)
    block_bytes = _block_bytes(kind)

    x_flat = jnp.ravel(x)  # metadata-only for contiguous x
    rows = n // LANE
    tail = n - rows * LANE

    if rows == 0:
        # Smaller than one lane row: plain JAX is cheapest (same numerics).
        y = jnp.sin(w0_f * x_flat.astype(jnp.float32) + b0_f).astype(dtype)
        return y.reshape(orig_shape)

    if tail == 0:
        # Aligned fast path (common case): zero wrapper-side copies.
        x2d = x_flat.reshape(rows, LANE)
        out2d = _siren_act_2d(x2d, w0_arr, b0_arr, num_tc, block_bytes)
        return out2d.reshape(orig_shape)

    # Unaligned path: kernel over the 128-aligned prefix, plain jnp on the
    # <128-element tail, then stitch.  Avoids padding + slicing full arrays.
    n_main = rows * LANE
    x2d = x_flat[:n_main].reshape(rows, LANE)
    out_main = _siren_act_2d(x2d, w0_arr, b0_arr, num_tc, block_bytes)
    x_tail = x_flat[n_main:]
    out_tail = jnp.sin(w0_f * x_tail.astype(jnp.float32) + b0_f).astype(dtype)
    out_flat = jnp.concatenate([out_main.reshape(-1), out_tail], axis=0)
    return out_flat.reshape(orig_shape)


if __name__ == "__main__":
    key = jax.random.PRNGKey(0)
    # Small NCHW input consistent with the module's typical use.
    x = jax.random.normal(key, (2, 4, 16, 16), dtype=jnp.float32)

    # Deterministic parameter init matching SirenAct.__init__(w0=2.0):
    w0 = jnp.float32(2.0)
    b0 = jnp.float32(0.0)

    y = jax.block_until_ready(siren_act(x, w0, b0))
    y_ref = jnp.sin(w0 * x + b0)
    assert y.shape == x.shape
    assert y.dtype == x.dtype
    assert jnp.allclose(y, y_ref, atol=1e-6, rtol=1e-6), "mismatch vs reference"

    # Larger, lane-aligned shape -> multi-block pipelined path.
    x_big = jax.random.normal(jax.random.PRNGKey(1), (8, 16, 64, 64), jnp.float32)
    y_big = jax.block_until_ready(siren_act(x_big, w0, b0))
    assert jnp.allclose(y_big, jnp.sin(w0 * x_big + b0), atol=1e-6, rtol=1e-6)

    # Unaligned size (n % 128 != 0) -> aligned-prefix kernel + jnp tail stitch.
    x_odd = jax.random.normal(jax.random.PRNGKey(2), (2, 5, 13, 13), jnp.float32)
    y_odd = jax.block_until_ready(siren_act(x_odd, w0, b0))
    assert jnp.allclose(y_odd, jnp.sin(w0 * x_odd + b0), atol=1e-6, rtol=1e-6)

    print("KERNEL_OK")
</pallas_src>

<mosaic_0001>
module attributes {stable_mosaic.version = 11 : i64} {
  func.func @_siren_act_kernel(%arg0: i32, %arg1: memref<1xf32, #tpu.memory_space<smem>>, %arg2: memref<1xf32, #tpu.memory_space<smem>>, %arg3: memref<8x128xf32, #tpu.memory_space<vmem>>, %arg4: memref<8x128xf32, #tpu.memory_space<vmem>>) attributes {dimension_semantics = [#tpu.dimension_semantics<parallel>], iteration_bounds = array<i64: 2>, scalar_prefetch = 0 : i64, scratch_operands = 0 : i64, tpu.core_type = #tpu.core_type<tc>, window_params = [{transform_indices = @transform_0, window_bounds = array<i64: 1>}, {transform_indices = @transform_1, window_bounds = array<i64: 1>}, {transform_indices = @transform_2, window_bounds = array<i64: 8, 128>}, {transform_indices = @transform_3, window_bounds = array<i64: 8, 128>}]} {
    %c0 = arith.constant 0 : index
    %0 = memref.load %arg1[%c0] : memref<1xf32, #tpu.memory_space<smem>>
    %c0_0 = arith.constant 0 : index
    %1 = memref.load %arg2[%c0_0] : memref<1xf32, #tpu.memory_space<smem>>
    %c0_1 = arith.constant 0 : index
    %c0_2 = arith.constant 0 : index
    %2 = vector.load %arg3[%c0_1, %c0_2] : memref<8x128xf32, #tpu.memory_space<vmem>>, vector<8x128xf32>
    %3 = vector.broadcast %0 : f32 to vector<8x128xf32>
    %4 = arith.mulf %3, %2 : vector<8x128xf32>
    %5 = vector.broadcast %1 : f32 to vector<8x128xf32>
    %6 = arith.addf %4, %5 : vector<8x128xf32>
    %7 = math.sin %6 : vector<8x128xf32>
    %c0_3 = arith.constant 0 : index
    %c0_4 = arith.constant 0 : index
    %8 = vector.load %arg4[%c0_3, %c0_4] : memref<8x128xf32, #tpu.memory_space<vmem>>, vector<8x128xf32>
    tpu.vector_store %arg4[%c0_3, %c0_4], %7 {strides = array<i32>} : memref<8x128xf32, #tpu.memory_space<vmem>>, vector<8x128xf32>,
    return
  }
  func.func @transform_0(%arg0: i32) -> i32 {
    %c0_i32 = arith.constant 0 : i32
    %c0_i32_0 = arith.constant 0 : i32
    return %c0_i32 : i32
  }
  func.func @transform_1(%arg0: i32) -> i32 {
    %c0_i32 = arith.constant 0 : i32
    %c0_i32_0 = arith.constant 0 : i32
    return %c0_i32 : i32
  }
  func.func @transform_2(%arg0: i32) -> (i32, i32) {
    %c0_i32 = arith.constant 0 : i32
    %c0_i32_0 = arith.constant 0 : i32
    return %arg0, %c0_i32 : i32, i32
  }
  func.func @transform_3(%arg0: i32) -> (i32, i32) {
    %c0_i32 = arith.constant 0 : i32
    %c0_i32_0 = arith.constant 0 : i32
    return %arg0, %c0_i32 : i32, i32
  }
}

</mosaic_0001>

<llo_original>
// kernel: tpu_custom_call.1
$region0: #{tpu_custom_call.1}
  #allocation0 [shape = 'u32[]', space=smem, size = 0x4, offset = 0x4, fixed_abs, tag = 'smem constant byte address 0x4 - core index']
  #allocation1 [shape = 'u32[144,128]{1,0:T(1,128)}', space=vmem, size = 0x12000, scoped, tag = 'internal scratch']
  #allocation2 [shape = 'f32[1]{0:T(128)S(6)}', space=smem, size = 0x200, scoped, tag = 'scoped memory for tpu_custom_call.1']
  #allocation3 [shape = 'f32[1]{0:T(128)S(6)}', space=smem, size = 0x200, scoped, tag = 'scoped memory for tpu_custom_call.1']
  %s0 = inlined_call_operand.<no memory space> [shape: f32[1], index: 0, kind: input, shape index: {}]
  %s1 = inlined_call_operand.<no memory space> [shape: f32[1], index: 1, kind: input, shape index: {}]
  %s2 = inlined_call_operand.hbm [shape: f32[16,128], index: 2, kind: input, shape index: {}]
  %s3 = inlined_call_operand.hbm [shape: f32[16,128], index: 3, kind: output, shape index: {}]
  %s4 = sld [smem:[#allocation0]]
  $region49: #{tpu_custom_call.1} parent=0
    _
  %s6 = ssub.s32 1, %s4
  %s7 = scalar_select 0, %s6, %s4
  %8 = sst [smem:[#allocation2]] %s0
  %9 = sst [smem:[#allocation3]] %s1
  $region1: #{tpu_custom_call.1} parent=0
    #allocation4 [shape = 'u8[8192]{0}', space=vmem, size = 0x2000, scoped, tag = 'input window, operand 2']
    #allocation5 [shape = 's32[2]{0}', space=sflag, size = 0x8, scoped, tag = 'scoped memory for tpu_custom_call.1']
    #allocation6 [shape = 's32[2]{0}', space=sflag, size = 0x8, scoped, tag = 'scoped memory for tpu_custom_call.1']
    #allocation7 [shape = 'u8[8192]{0}', space=vmem, size = 0x2000, scoped, tag = 'output window, operand 0']
    %10 = vsyncpa [#allocation5], 0
    %s11 = scalar_lea.sflag [#allocation5], 1
    %12 = vsyncpa %s11, 0
    %13 = vsyncpa [#allocation6], 0
    %s14 = scalar_lea.sflag [#allocation6], 1
    %15 = vsyncpa %s14, 0
    loop: start=0, step=1, limit=4
    $region2: #{tpu_custom_call.1} parent=1 // loop_pre_header
      _
    $region3: #{tpu_custom_call.1} parent=1 // loop_header
      %s17 = sphi 0, %s21
      %p18 = scmp.ge.s32.totalorder %s17, 4
      %s25 = sphi 0, %s25
      %s27 = sphi 0, %s25
      %s28 = sphi 0, %s27
      %s42 = sphi 0, %s28
      %s46 = sphi 0, %s46
      %s48 = sphi 0, %s46
      %s49 = sphi 0, %s48
      %s63 = sphi 0, %s49
      %s69 = sphi 0, %s71
      %s72 = sphi 0, %s69
      %s73 = sphi 0, %s72
      %s89 = sphi 0, %s73
      %s95 = sphi 0, %s97
      %s98 = sphi 0, %s95
      %s99 = sphi 0, %s98
      %s115 = sphi 0, %s99
    $region4: #{tpu_custom_call.1} parent=1 // loop_header_branch
      %20 = sbr.rel (%p18) target = $region8
    $region5: #{tpu_custom_call.1} parent=1 // loop_body
      %s22 = ssub.s32 %s17, 1
      %s23 = ssub.s32 %s17, 2
      %s24 = sadd.s32 %s17, 1
      %s26 = sadd.s32 %s25, 1
      %p29 = scmp.eq.s32.totalorder %s17, 1
      %p30 = scmp.ne.s32.totalorder %s25, %s27
      %p31 = scmp.eq.s32.totalorder %s17, 0
      %p32 = por %p30, %p31
      %p33 = scmp.ne.s32.totalorder %s25, %s27
      %p34 = scmp.eq.s32.totalorder %s22, 1
      %p35 = por %p33, %p34
      %p36 = scmp.ne.s32.totalorder %s27, %s28
      %p37 = scmp.eq.s32.totalorder %s22, 0
      %p38 = por %p36, %p37
      %p39 = scmp.ne.s32.totalorder %s27, %s28
      %p40 = scmp.eq.s32.totalorder %s23, 1
      %p41 = por %p39, %p40
      %p43 = scmp.ne.s32.totalorder %s28, %s42
      %p44 = scmp.eq.s32.totalorder %s23, 0
      %p45 = por %p43, %p44
      %s47 = sadd.s32 %s46, 1
      %p50 = scmp.eq.s32.totalorder %s17, 1
      %p51 = scmp.ne.s32.totalorder %s46, %s48
      %p52 = scmp.eq.s32.totalorder %s17, 0
      %p53 = por %p51, %p52
      %p54 = scmp.ne.s32.totalorder %s46, %s48
      %p55 = scmp.eq.s32.totalorder %s22, 1
      %p56 = por %p54, %p55
      %p57 = scmp.ne.s32.totalorder %s48, %s49
      %p58 = scmp.eq.s32.totalorder %s22, 0
      %p59 = por %p57, %p58
      %p60 = scmp.ne.s32.totalorder %s48, %s49
      %p61 = scmp.eq.s32.totalorder %s23, 1
      %p62 = por %p60, %p61
      %p64 = scmp.ne.s32.totalorder %s49, %s63
      %p65 = scmp.eq.s32.totalorder %s23, 0
      %p66 = por %p64, %p65
      %s67 = ssub.s32 %s17, %s24
      %p68 = scmp.eq.s32.totalorder %s67, 0
      %s70 = sadd.s32 %s69, 1
      %s71 = scalar_select %p68, %s69, %s70
      %p74 = pneg %p68
      %p75 = scmp.eq.s32.totalorder %s17, 1
      %p76 = por %p74, %p75
      %p77 = scmp.ne.s32.totalorder %s69, %s72
      %p78 = scmp.eq.s32.totalorder %s17, 0
      %p79 = por %p77, %p78
      %p80 = scmp.ne.s32.totalorder %s69, %s72
      %p81 = scmp.eq.s32.totalorder %s22, 1
      %p82 = por %p80, %p81
      %p83 = scmp.ne.s32.totalorder %s72, %s73
      %p84 = scmp.eq.s32.totalorder %s22, 0
      %p85 = por %p83, %p84
      %p86 = scmp.ne.s32.totalorder %s72, %s73
      %p87 = scmp.eq.s32.totalorder %s23, 1
      %p88 = por %p86, %p87
      %p90 = scmp.ne.s32.totalorder %s73, %s89
      %p91 = scmp.eq.s32.totalorder %s23, 0
      %p92 = por %p90, %p91
      %s93 = ssub.s32 %s17, %s24
      %p94 = scmp.eq.s32.totalorder %s93, 0
      %s96 = sadd.s32 %s95, 1
      %s97 = scalar_select %p94, %s95, %s96
      %p100 = pneg %p94
      %p101 = scmp.eq.s32.totalorder %s17, 1
      %p102 = por %p100, %p101
      %p103 = scmp.ne.s32.totalorder %s95, %s98
      %p104 = scmp.eq.s32.totalorder %s17, 0
      %p105 = por %p103, %p104
      %p106 = scmp.ne.s32.totalorder %s95, %s98
      %p107 = scmp.eq.s32.totalorder %s22, 1
      %p108 = por %p106, %p107
      %p109 = scmp.ne.s32.totalorder %s98, %s99
      %p110 = scmp.eq.s32.totalorder %s22, 0
      %p111 = por %p109, %p110
      %p112 = scmp.ne.s32.totalorder %s98, %s99
      %p113 = scmp.eq.s32.totalorder %s23, 1
      %p114 = por %p112, %p113
      %p116 = scmp.ne.s32.totalorder %s99, %s115
      %p117 = scmp.eq.s32.totalorder %s23, 0
      %p118 = por %p116, %p117
      %p119 = scmp.le.s32.totalorder 1, %s17
      %p120 = scmp.lt.s32.totalorder %s17, 3
      %p121 = pnand %p119, %p120
      %p122 = pneg %p121
      // Predicated region
      $region9: #{tpu_custom_call.1} parent=5 // pred_check
        _
      $region10: #{tpu_custom_call.1} parent=5 // pred_check_branch
        %124 = sbr.rel (%p121) target = $region12
      $region11: #{tpu_custom_call.1} parent=5 // pred_region
        %s125 = ssub.s32 %s17, 1
        // Predicated region
        $region13: #{tpu_custom_call.1} parent=11 // pred_check
          %p126 = pneg %p38
        $region14: #{tpu_custom_call.1} parent=11 // pred_check_branch
          %128 = sbr.rel (%p126) target = $region16
        $region15: #{tpu_custom_call.1} parent=11 // pred_region
          _
        $region16: #{tpu_custom_call.1} parent=11 // pred_fallthru
          _
        // Predicated region
        $region17: #{tpu_custom_call.1} parent=11 // pred_check
          %p129 = pneg %p59
        $region18: #{tpu_custom_call.1} parent=11 // pred_check_branch
          %131 = sbr.rel (%p129) target = $region20
        $region19: #{tpu_custom_call.1} parent=11 // pred_region
          _
        $region20: #{tpu_custom_call.1} parent=11 // pred_fallthru
          _
      $region12: #{tpu_custom_call.1} parent=5 // pred_fallthru
        _
      %p132 = scmp.lt.s32.totalorder %s17, 2
      // Predicated region
      $region21: #{tpu_custom_call.1} parent=5 // pred_check
        %p133 = pneg %p132
      $region22: #{tpu_custom_call.1} parent=5 // pred_check_branch
        %135 = sbr.rel (%p133) target = $region24
      $region23: #{tpu_custom_call.1} parent=5 // pred_region
        // Predicated region
        $region25: #{tpu_custom_call.1} parent=23 // pred_check
          %p136 = pneg %p79
        $region26: #{tpu_custom_call.1} parent=23 // pred_check_branch
          %138 = sbr.rel (%p136) target = $region28
        $region27: #{tpu_custom_call.1} parent=23 // pred_region
          %s139 = sand.u32 %s69, 1
          %s140 = scalar_lea.sflag [#allocation5], %s139
          %s141 = sand.u32 %s69, 1
          %s142 = smul.addr %s141, 8
          %s143 = scalar_lea.vmem [#allocation4], %s142
          %s145 = ssub.s32 128, 128
          %146 = vsyncadd %s140, %s145
          %s147 = smul.addr %s17, 128
          %s148 = scalar_lea.hbm %s2, %s147
          %s150 = sshll.u32 %s143, 4
          %s151 = int_to_ptr.vmem [resolvable:$true] %s150
          %153 = dma.hbm_to_vmem [thread:$0]  %s148, 128, %s151, %s140
        $region28: #{tpu_custom_call.1} parent=23 // pred_fallthru
          _
      $region24: #{tpu_custom_call.1} parent=5 // pred_fallthru
        _
      %p154 = scmp.le.s32.totalorder 1, %s17
      %p155 = scmp.lt.s32.totalorder %s17, 3
      %p156 = pnand %p154, %p155
      %p157 = pneg %p156
      // Predicated region
      $region29: #{tpu_custom_call.1} parent=5 // pred_check
        _
      $region30: #{tpu_custom_call.1} parent=5 // pred_check_branch
        %159 = sbr.rel (%p156) target = $region32
      $region31: #{tpu_custom_call.1} parent=5 // pred_region
        %s160 = ssub.s32 %s17, 1
        %s161 = sand.u32 %s72, 1
        %s162 = scalar_lea.sflag [#allocation5], %s161
        %s163 = sand.u32 %s72, 1
        %s164 = smul.addr %s163, 8
        %s165 = scalar_lea.vmem [#allocation4], %s164
        // Predicated region
        $region33: #{tpu_custom_call.1} parent=31 // pred_check
          %p166 = pneg %p85
        $region34: #{tpu_custom_call.1} parent=31 // pred_check_branch
          %168 = sbr.rel (%p166) target = $region36
        $region35: #{tpu_custom_call.1} parent=31 // pred_region
          %169 = dma.done %s162, 128
        $region36: #{tpu_custom_call.1} parent=31 // pred_fallthru
          _
        %p170 = pneg %p38
        %p171 = pneg %p35
        %p172 = pneg %p59
        %p173 = pneg %p56
        %s174 = sand.u32 %s72, 1
        %s175 = scalar_lea.sflag [#allocation5], %s174
        %s176 = sand.u32 %s72, 1
        %s177 = smul.addr %s176, 8
        %s178 = scalar_lea.vmem [#allocation4], %s177
        %p179 = pneg %p85
        %p180 = pneg %p82
        %p181 = pneg %p111
        %p182 = pneg %p108
        %s183 = sand.u32 %s98, 1
        %s184 = scalar_lea.sflag [#allocation6], %s183
        %s185 = sand.u32 %s98, 1
        %s186 = smul.addr %s185, 8
        %s187 = scalar_lea.vmem [#allocation7], %s186
        %s188 = sld [smem:[#allocation2]]
        %s189 = sld [smem:[#allocation3]]
        %v190 = vld [vmem:[%s165] sm:$0xff]
        %v191 = vstv %s188
        %v192 = vmul.f32 %v191, %v190
        %v193 = vstv %s189
        %v194 = vadd.f32 %v192, %v193
        %v195 = vand.u32 2147483647, %v194
        %vm196 = vcmp.le.f32.partialorder %v195, 0.7853982
        %vm197 = vcmp.lt.s32.totalorder %v194, 0
        %v198 = vand.u32 %v194, 2139095040
        %v199 = vshrl.u32 %v198, 23
        %v200 = vsub.s32 %v199, 127
        %v201 = vand.u32 2147483647, %v194
        %v202 = vand.u32 %v201, 8388607
        %v203 = vor.u32 %v202, 8388608
        %v204 = vsub.s32 0, %v203
        %v205 = vadd.s32 %v200, 1
        %vm206 = vcmp.gt.s32.totalorder %v205, 0
        %v207 = vsel %vm206, %v205, 0
        %v208 = vshrl.u32 %v207, 5
        %v209 = vand.u32 %v207, 31
        %v210 = vsub.s32 32, %v209
        %v211 = vshrl.u32 683565275, %v210
        %v212 = vshll.u32 683565275, %v209
        %v213 = vshrl.u32 2475754826, %v210
        %v214 = vor.u32 %v212, %v213
        %v215 = vshll.u32 2475754826, %v209
        %v216 = vshrl.u32 2131351028, %v210
        %v217 = vor.u32 %v215, %v216
        %v218 = vshll.u32 2131351028, %v209
        %v219 = vshrl.u32 2102212464, %v210
        %v220 = vor.u32 %v218, %v219
        %v221 = vshll.u32 2102212464, %v209
        %v222 = vshrl.u32 920167782, %v210
        %v223 = vor.u32 %v221, %v222
        %v224 = vshll.u32 920167782, %v209
        %v225 = vshrl.u32 1326507024, %v210
        %v226 = vor.u32 %v224, %v225
        %vm227 = vcmp.lt.s32.totalorder %v208, 1
        %vm228 = vcmp.lt.s32.totalorder %v208, 2
        %vm229 = vcmp.lt.s32.totalorder %v208, 3
        %vm230 = vcmp.lt.s32.totalorder %v208, 4
        %v231 = vsel %vm227, %v211, %v214
        %v232 = vsel %vm230, %v220, 2102212464
        %v233 = vsel %vm229, %v217, %v232
        %v234 = vsel %vm228, %v231, %v233
        %v235 = vsel %vm227, %v214, %v217
        %v236 = vsel %vm230, %v223, 920167782
        %v237 = vsel %vm229, %v220, %v236
        %v238 = vsel %vm228, %v235, %v237
        %v239 = vsel %vm227, %v217, %v220
        %v240 = vsel %vm230, %v226, 1326507024
        %v241 = vsel %vm229, %v223, %v240
        %v242 = vsel %vm228, %v239, %v241
        %v243 = vshll.u32 %v203, 8
        %v244 = vmul.u32.u64.compose %v243, %v242
        %v245 = vextract.low.u32 %v244
        %v246 = vextract.high.u32 %v244
        %v247 = vmul.u32.u64.compose %v243, %v238
        %v248 = vextract.low.u32 %v247
        %v249 = vextract.high.u32 %v247
        %v250 = vmul.u32 %v243, %v234
        %v251 = vadd.s32 %v246, %v248
        %vm252 = vc.u32 %v246, %v248
        %v253 = vadd.s32 %v249, 1
        %v254 = vsel %vm252, %v253, %v249
        %v255 = vadd.s32 %v250, %v254
        %v256 = vadd.s32 %v255, 536870912
        %v257 = vshrl.u32 %v256, 30
        %v258 = vshll.u32 %v257, 30
        %v259 = vsub.s32 %v255, %v258
        %vm260 = vcmp.lt.s32.totalorder %v259, 0
        %v261 = vsub.s32 0, %v259
        %v262 = vsel %vm260, %v261, %v259
        %v263 = vclz %v262
        %v264 = vsub.s32 %v263, 2
        %vm265 = vcmp.gt.s32.totalorder 0, %v264
        %v266 = vsel %vm265, 0, %v264
        %v267 = vsub.s32 32, %v266
        %v268 = vshll.u32 %v259, %v266
        %v269 = vshrl.u32 %v251, %v267
        %v270 = vor.u32 %v268, %v269
        %v271 = vsub.s32 4294967266, %v266
        %v272 = vadd.s32 %v271, 127
        %v273 = vshll.u32 %v272, 23
        %v274 = vor.u32 4788187, %v273
        %v275 = vand.u32 2147483647, %v274
        %v277 = vcvt.s32.f32 %v270
        %v278 = vmul.f32 %v277, %v275
        %v279 = vxor.u32 %v278, 2147483648
        %v280 = vsel %vm197, %v279, %v278
        %v281 = vsub.s32 4, %v257
        %v282 = vsel %vm197, %v281, %v257
        %v283 = vsel %vm196, %v194, %v280
        %v284 = vsel %vm196, 0, %v282
        %v285 = vcosq.f32.pop %v283
        %v286 = vsinq.f32.pop %v283
        %vm287 = vweird.f32 %v194
        %v288 = vadd.s32 %v284, 3
        %v289 = vand.u32 %v288, 3
        %vm290 = vcmp.lt.s32.totalorder %v289, 2
        %vm291 = vcmp.eq.s32.totalorder %v289, 0
        %v292 = vxor.u32 %v286, 2147483648
        %v293 = vsel %vm291, %v285, %v292
        %vm294 = vcmp.eq.s32.totalorder %v289, 2
        %v295 = vxor.u32 %v285, 2147483648
        %v296 = vsel %vm294, %v295, %v286
        %v297 = vsel %vm290, %v293, %v296
        %v298 = vsel %vm287, nan, %v297
        %299 = vst [vmem:[%s187] sm:$0xff] %v298
        %s300 = sand.u32 %s98, 1
        %s301 = scalar_lea.sflag [#allocation6], %s300
        %s302 = sand.u32 %s98, 1
        %s303 = smul.addr %s302, 8
        %s304 = scalar_lea.vmem [#allocation7], %s303
        // Predicated region
        $region37: #{tpu_custom_call.1} parent=31 // pred_check
          %p305 = pneg %p108
        $region38: #{tpu_custom_call.1} parent=31 // pred_check_branch
          %307 = sbr.rel (%p305) target = $region40
        $region39: #{tpu_custom_call.1} parent=31 // pred_region
          %s309 = ssub.s32 128, 128
          %310 = vsyncadd %s301, %s309
          %s311 = smul.addr %s22, 128
          %s312 = scalar_lea.hbm %s3, %s311
          %s314 = sshll.u32 %s304, 4
          %s315 = int_to_ptr.vmem [resolvable:$true] %s314
          %317 = dma.vmem_to_hbm [thread:$0]  %s315, 128, %s312, %s301
        $region40: #{tpu_custom_call.1} parent=31 // pred_fallthru
          _
      $region32: #{tpu_custom_call.1} parent=5 // pred_fallthru
        _
      %p318 = scmp.le.s32.totalorder 2, %s17
      // Predicated region
      $region41: #{tpu_custom_call.1} parent=5 // pred_check
        %p319 = pneg %p318
      $region42: #{tpu_custom_call.1} parent=5 // pred_check_branch
        %321 = sbr.rel (%p319) target = $region44
      $region43: #{tpu_custom_call.1} parent=5 // pred_region
        %s322 = ssub.s32 %s17, 2
        // Predicated region
        $region45: #{tpu_custom_call.1} parent=43 // pred_check
          %p323 = pneg %p114
        $region46: #{tpu_custom_call.1} parent=43 // pred_check_branch
          %325 = sbr.rel (%p323) target = $region48
        $region47: #{tpu_custom_call.1} parent=43 // pred_region
          %s326 = sand.u32 %s99, 1
          %s327 = scalar_lea.sflag [#allocation6], %s326
          %s328 = sand.u32 %s99, 1
          %s329 = smul.addr %s328, 8
          %s330 = scalar_lea.vmem [#allocation7], %s329
          %331 = dma.done %s327, 128
        $region48: #{tpu_custom_call.1} parent=43 // pred_fallthru
          _
      $region44: #{tpu_custom_call.1} parent=5 // pred_fallthru
        _
    $region6: #{tpu_custom_call.1} parent=1 // loop_footer
      %s21 = sadd.s32 1, %s17
    $region7: #{tpu_custom_call.1} parent=1 // loop_footer_branch
      %16 = sbr.rel target = $region3
    $region8: #{tpu_custom_call.1} parent=1 // loop_exit
      _
    %332 = vsyncpa [#allocation5], 1
    %s333 = scalar_lea.sflag [#allocation5], 1
    %334 = vsyncpa %s333, 1
    %335 = vsyncpa [#allocation6], 1
    %s336 = scalar_lea.sflag [#allocation6], 1
    %337 = vsyncpa %s336, 1

</llo_original>
